<compile_context>
chip_gen: v6e
topology: v6e:2x2x1
jax: 0.10.0
libtpu: 0.0.40
codegen_flags: <defaults>
</compile_context>

<pallas_src>
import jax
import jax.numpy as jnp
from jax.experimental import pallas as pl
from jax.experimental.pallas import tpu as pltpu


def _mini_classifier_kernel(ntiles_ref, len_ref, hidden_ref, w_ref, b_ref,
                            out_ref, acc_ref):
    """One (batch_tile, seq_tile) grid step of masked mean-pool + linear head.

    ntiles_ref: [num_batch_tiles] int32 SMEM (seq tiles needed per batch tile)
    len_ref:    [TB, 1]      int32 (valid-token counts for this batch tile)
    hidden_ref: [TB, TS, H]  f32/bf16
    w_ref:      [H, Lp]      f32  (resident across the grid)
    b_ref:      [1, Lp]      f32  (resident across the grid)
    out_ref:    [TB, Lp]     f32  (written only on the last seq step)
    acc_ref:    [TB, H]      f32  VMEM scratch accumulator
    """
    bi = pl.program_id(0)
    si = pl.program_id(1)
    tb, ts, _ = hidden_ref.shape          # static block shape

    @pl.when(si == 0)
    def _init():
        acc_ref[...] = jnp.zeros_like(acc_ref)

    # Only accumulate seq tiles that contain at least one valid token for this
    # batch tile; fully-masked tiles were also never DMA'd (index_map clamp).
    @pl.when(si < ntiles_ref[bi])
    def _accumulate():
        # 3D sublane iota + select: no [TB,TS]->[TB,TS,H] relayout, and OOB /
        # padded tail data is dropped by the select (never multiplied).
        pos = jax.lax.broadcasted_iota(jnp.int32, (tb, ts, 1), 1) + si * ts
        lens3 = len_ref[...].reshape(tb, 1, 1)                     # int32
        h = hidden_ref[...].astype(jnp.float32)                    # [TB, TS, H]
        acc_ref[...] += jnp.sum(jnp.where(pos < lens3, h, 0.0), axis=1)

    @pl.when(si == pl.num_programs(1) - 1)
    def _finalize():
        denom = jnp.maximum(len_ref[...].astype(jnp.float32), 1.0)  # [TB, 1]
        pooled = acc_ref[...] / denom                               # exact div
        logits = jnp.dot(pooled, w_ref[...],
                         preferred_element_type=jnp.float32) + b_ref[...]
        out_ref[...] = logits.astype(out_ref.dtype)


def _vmem_budget():
    """(per-hidden-buffer byte budget, vmem_limit_bytes), generation-aware."""
    try:
        cap = pltpu.get_tpu_info().vmem_capacity_bytes
    except Exception:
        cap = 64 << 20                      # conservative (v7x-sized) fallback
    if cap >= (100 << 20):                  # v5e / v6e: 128 MiB physical VMEM
        return 12 << 20, 64 << 20
    return 6 << 20, 40 << 20                # v7x: 64 MiB per TensorCore


def _pick_batch_tile(B):
    # Output/length blocks need their sublane dim to be a multiple of 8 or the
    # full batch.  Prefer >= 2 batch grid steps so the "parallel" axis can
    # shard across v7x's two TensorCores.
    for cand in (128, 64, 32, 16, 8):
        if B % cand == 0 and B // cand >= 2:
            return cand
    return 8 if B % 8 == 0 else B


def _pick_seq_tile(S, TB, H, itemsize, budget_bytes):
    # Largest sublane-aligned seq tile whose hidden block fits the per-buffer
    # budget.  TS does NOT have to divide S (grid uses cdiv + in-kernel tail
    # masking), so it never collapses to tiny tiles nor to an untiled block.
    sub = 8 * max(1, 4 // itemsize)         # 8 f32, 16 bf16, 32 for 1-byte
    s_pad = ((S + sub - 1) // sub) * sub
    max_ts = budget_bytes // max(TB * H * itemsize, 1)
    ts = min(max_ts, s_pad)
    ts = max((ts // sub) * sub, sub)
    return ts


def mini_classifier(hidden, lengths, w, b):
    """Masked mean-pool over seq + linear head. hidden [B,S,H], lengths [B]."""
    B, S, H = hidden.shape
    L = w.shape[1]

    # Pad the label dim to a multiple of 128 so the output store is lane-dense.
    L_pad = ((L + 127) // 128) * 128
    if L_pad != L:
        w = jnp.pad(w, ((0, 0), (0, L_pad - L)))
        b = jnp.pad(b, (0, L_pad - L))
    w = w.astype(jnp.float32)
    b2 = b.astype(jnp.float32).reshape(1, L_pad)

    # int32 lengths end-to-end; clamp to S so the in-kernel compare also masks
    # the OOB tail of the last (cdiv) seq tile.
    lens_i32 = jnp.minimum(lengths.astype(jnp.int32), S).reshape(B, 1)

    TB = _pick_batch_tile(B)
    budget, vmem_limit = _vmem_budget()
    TS = _pick_seq_tile(S, TB, H, hidden.dtype.itemsize, budget)
    nbt = B // TB
    n_seq = pl.cdiv(S, TS)
    grid = (nbt, n_seq)

    # Seq tiles actually needed per batch tile (scalar-prefetched to SMEM so
    # the hidden index_map can clamp away fully-masked tiles -> no HBM DMA).
    max_len_tile = jnp.max(lens_i32.reshape(nbt, TB), axis=1)          # [nbt]
    ntiles = ((max_len_tile + TS - 1) // TS).astype(jnp.int32)         # [nbt]

    def hidden_map(bi, si, nt):
        # Clamp to the last needed seq tile: repeated block index => no re-DMA.
        return (bi, jnp.minimum(si, jnp.maximum(nt[bi] - 1, 0)), 0)

    out = pl.pallas_call(
        _mini_classifier_kernel,
        out_shape=jax.ShapeDtypeStruct((B, L_pad), jnp.float32),
        grid_spec=pltpu.PrefetchScalarGridSpec(
            num_scalar_prefetch=1,
            grid=grid,
            in_specs=[
                pl.BlockSpec((TB, 1), lambda bi, si, nt: (bi, 0)),      # lengths
                pl.BlockSpec((TB, TS, H), hidden_map),                  # hidden
                pl.BlockSpec((H, L_pad), lambda bi, si, nt: (0, 0)),    # W (resident)
                pl.BlockSpec((1, L_pad), lambda bi, si, nt: (0, 0)),    # bias (resident)
            ],
            out_specs=pl.BlockSpec((TB, L_pad), lambda bi, si, nt: (bi, 0)),
            scratch_shapes=[pltpu.VMEM((TB, H), jnp.float32)],
        ),
        compiler_params=pltpu.CompilerParams(
            dimension_semantics=("parallel", "arbitrary"),
            vmem_limit_bytes=vmem_limit,
        ),
    )(ntiles, lens_i32, hidden, w, b2)
    return out[:, :L]


def _reference(hidden, lengths, w, b):
    S = hidden.shape[1]
    h = hidden.astype(jnp.float32)
    mask = (jnp.arange(S)[None, :] < lengths[:, None]).astype(jnp.float32)
    pooled = (h * mask[:, :, None]).sum(axis=1) / jnp.maximum(
        mask.sum(axis=1, keepdims=True), 1.0)
    return pooled @ w + b


def _run_case(key, B, S, H, L, lengths, dtype=jnp.float32):
    k_h, k_w, k_b = jax.random.split(key, 3)
    hidden = jax.random.normal(k_h, (B, S, H), dtype=jnp.float32).astype(dtype)
    bound = 1.0 / float(H) ** 0.5
    w = jax.random.uniform(k_w, (H, L), jnp.float32, minval=-bound, maxval=bound)
    b = jax.random.uniform(k_b, (L,), jnp.float32, minval=-bound, maxval=bound)

    logits = jax.block_until_ready(mini_classifier(hidden, lengths, w, b))
    logits_ref = _reference(hidden, lengths, w, b)

    assert logits.shape == (B, L)
    assert jnp.allclose(logits, logits_ref, atol=1e-3, rtol=1e-3), (
        float(jnp.max(jnp.abs(logits - logits_ref))))


if __name__ == "__main__":
    key = jax.random.PRNGKey(0)
    k1, k2, k3, k4 = jax.random.split(key, 4)

    # Small shapes implied by the module: batch=2, seq=8, hidden(input_size)=32,
    # labels_num=8.  Single-block grid (1, 1).
    _run_case(k1, B=2, S=8, H=32, L=8,
              lengths=jnp.array([6, 4], dtype=jnp.int32))

    # Tiled grid, ragged lengths (including 0), 2 "parallel" batch steps.
    B2, S2 = 16, 1024
    lens2 = (jnp.arange(B2, dtype=jnp.int32) * 37) % (S2 + 1)
    _run_case(k2, B=B2, S=S2, H=128, L=8, lengths=lens2)

    # Non-dividing S (cdiv grid + OOB tail masking) and strongly ragged lengths:
    # batch tile 0 needs only 1 seq tile (tile-skip path), tile 1 needs them all.
    lens3 = jnp.array([0, 1, 7, 50, 300, 299, 123, 77,
                       3000, 2999, 512, 1500, 8, 640, 100, 2048],
                      dtype=jnp.int32)
    _run_case(k3, B=16, S=3000, H=256, L=10, lengths=lens3)

    # bf16 hidden (native dtype streamed from HBM, cast to f32 in-kernel).
    lens4 = jnp.array([512, 0, 17, 300, 511, 64, 128, 1], dtype=jnp.int32)
    _run_case(k4, B=8, S=512, H=128, L=4, lengths=lens4, dtype=jnp.bfloat16)

    print("KERNEL_OK")
</pallas_src>

<mosaic_0001>
module attributes {stable_mosaic.version = 11 : i64} {
  func.func @_mini_classifier_kernel(%arg0: i32, %arg1: i32, %arg2: memref<1xi32, #tpu.memory_space<smem>>, %arg3: memref<2x1xi32, #tpu.memory_space<vmem>>, %arg4: memref<2x8x32xf32, #tpu.memory_space<vmem>>, %arg5: memref<32x128xf32, #tpu.memory_space<vmem>>, %arg6: memref<1x128xf32, #tpu.memory_space<vmem>>, %arg7: memref<2x128xf32, #tpu.memory_space<vmem>>, %arg8: memref<2x32xf32, #tpu.memory_space<vmem>>) attributes {dimension_semantics = [#tpu.dimension_semantics<parallel>, #tpu.dimension_semantics<arbitrary>], iteration_bounds = array<i64: 1, 1>, scalar_prefetch = 1 : i64, scratch_operands = 1 : i64, tpu.core_type = #tpu.core_type<tc>, window_params = [{transform_indices = @transform_0, window_bounds = array<i64: 2, 1>}, {transform_indices = @transform_1, window_bounds = array<i64: 2, 8, 32>}, {pipeline_mode = #tpu.pipeline_mode<synchronous>, transform_indices = @transform_2, window_bounds = array<i64: 32, 128>}, {pipeline_mode = #tpu.pipeline_mode<synchronous>, transform_indices = @transform_3, window_bounds = array<i64: 1, 128>}, {transform_indices = @transform_4, window_bounds = array<i64: 2, 128>}]} {
    %c0_i32 = arith.constant 0 : i32
    %0 = arith.cmpi eq, %arg1, %c0_i32 : i32
    %1 = arith.extui %0 : i1 to i32
    %c0_i32_0 = arith.constant 0 : i32
    %2 = arith.cmpi ne, %1, %c0_i32_0 : i32
    scf.if %2 {
      %cst = arith.constant 0.000000e+00 : f32
      %11 = vector.broadcast %cst : f32 to vector<2x32xf32>
      %c0 = arith.constant 0 : index
      %c0_4 = arith.constant 0 : index
      %12 = vector.load %arg8[%c0, %c0_4] : memref<2x32xf32, #tpu.memory_space<vmem>>, vector<2x32xf32>
      tpu.vector_store %arg8[%c0, %c0_4], %11 {strides = array<i32>} : memref<2x32xf32, #tpu.memory_space<vmem>>, vector<2x32xf32>,
    } else {
    }
    %3 = arith.index_cast %arg0 : i32 to index
    %4 = memref.load %arg2[%3] : memref<1xi32, #tpu.memory_space<smem>>
    %5 = arith.cmpi slt, %arg1, %4 : i32
    %6 = arith.extui %5 : i1 to i32
    %c0_i32_1 = arith.constant 0 : i32
    %7 = arith.cmpi ne, %6, %c0_i32_1 : i32
    scf.if %7 {
      %11 = tpu.iota {dimensions = array<i32: 1>} : vector<2x8x1xi32>
      %c8_i32 = arith.constant 8 : i32
      %12 = arith.muli %arg1, %c8_i32 : i32
      %13 = vector.broadcast %12 : i32 to vector<2x8x1xi32>
      %14 = arith.addi %11, %13 : vector<2x8x1xi32>
      %c0 = arith.constant 0 : index
      %c0_4 = arith.constant 0 : index
      %15 = vector.load %arg3[%c0, %c0_4] : memref<2x1xi32, #tpu.memory_space<vmem>>, vector<2x1xi32>
      %16 = vector.shape_cast %15 : vector<2x1xi32> to vector<2x1x1xi32>
      %c0_5 = arith.constant 0 : index
      %c0_6 = arith.constant 0 : index
      %c0_7 = arith.constant 0 : index
      %17 = vector.load %arg4[%c0_5, %c0_6, %c0_7] : memref<2x8x32xf32, #tpu.memory_space<vmem>>, vector<2x8x32xf32>
      %c0_8 = arith.constant 0 : index
      %c0_9 = arith.constant 0 : index
      %18 = vector.load %arg8[%c0_8, %c0_9] : memref<2x32xf32, #tpu.memory_space<vmem>>, vector<2x32xf32>
      %19 = vector.broadcast %16 : vector<2x1x1xi32> to vector<2x8x1xi32>
      %20 = arith.cmpi slt, %14, %19 : vector<2x8x1xi32>
      %cst = arith.constant 0.000000e+00 : f32
      %21 = vector.shape_cast %20 : vector<2x8x1xi1> to vector<2x8x1xi1>
      %22 = vector.broadcast %21 : vector<2x8x1xi1> to vector<2x8x32xi1>
      %23 = vector.broadcast %cst : f32 to vector<2x8x32xf32>
      %24 = arith.select %22, %17, %23 : vector<2x8x32xi1>, vector<2x8x32xf32>
      %cst_10 = arith.constant dense<0.000000e+00> : vector<2x32xf32>
      %25 = vector.multi_reduction <add>, %24, %cst_10 [1] : vector<2x8x32xf32> to vector<2x32xf32>
      %26 = arith.addf %18, %25 : vector<2x32xf32>
      %c0_11 = arith.constant 0 : index
      %c0_12 = arith.constant 0 : index
      %27 = vector.load %arg8[%c0_11, %c0_12] : memref<2x32xf32, #tpu.memory_space<vmem>>, vector<2x32xf32>
      tpu.vector_store %arg8[%c0_11, %c0_12], %26 {strides = array<i32>} : memref<2x32xf32, #tpu.memory_space<vmem>>, vector<2x32xf32>,
    } else {
    }
    %c0_i32_2 = arith.constant 0 : i32
    %8 = arith.cmpi eq, %arg1, %c0_i32_2 : i32
    %9 = arith.extui %8 : i1 to i32
    %c0_i32_3 = arith.constant 0 : i32
    %10 = arith.cmpi ne, %9, %c0_i32_3 : i32
    scf.if %10 {
      %c0 = arith.constant 0 : index
      %c0_4 = arith.constant 0 : index
      %11 = vector.load %arg3[%c0, %c0_4] : memref<2x1xi32, #tpu.memory_space<vmem>>, vector<2x1xi32>
      %12 = arith.sitofp %11 : vector<2x1xi32> to vector<2x1xf32>
      %cst = arith.constant 1.000000e+00 : f32
      %13 = vector.broadcast %cst : f32 to vector<2x1xf32>
      %14 = arith.maximumf %12, %13 : vector<2x1xf32>
      %c0_5 = arith.constant 0 : index
      %c0_6 = arith.constant 0 : index
      %15 = vector.load %arg8[%c0_5, %c0_6] : memref<2x32xf32, #tpu.memory_space<vmem>>, vector<2x32xf32>
      %16 = vector.broadcast %14 : vector<2x1xf32> to vector<2x32xf32>
      %17 = arith.divf %15, %16 : vector<2x32xf32>
      %c0_7 = arith.constant 0 : index
      %c0_8 = arith.constant 0 : index
      %18 = vector.load %arg5[%c0_7, %c0_8] : memref<32x128xf32, #tpu.memory_space<vmem>>, vector<32x128xf32>
      %cst_9 = arith.constant dense<0.000000e+00> : vector<2x128xf32>
      %19 = tpu.matmul %17, %18, %cst_9 {dimension_numbers = #tpu.dot_dimension_numbers<[1], [0], [0], [1], [0, 0, 1, 1], [], []>} : vector<2x32xf32>, vector<32x128xf32>, vector<2x128xf32> -> vector<2x128xf32>
      %c0_10 = arith.constant 0 : index
      %c0_11 = arith.constant 0 : index
      %20 = vector.load %arg6[%c0_10, %c0_11] : memref<1x128xf32, #tpu.memory_space<vmem>>, vector<1x128xf32>
      %21 = vector.broadcast %20 : vector<1x128xf32> to vector<2x128xf32>
      %22 = arith.addf %19, %21 : vector<2x128xf32>
      %c0_12 = arith.constant 0 : index
      %c0_13 = arith.constant 0 : index
      %23 = vector.load %arg7[%c0_12, %c0_13] : memref<2x128xf32, #tpu.memory_space<vmem>>, vector<2x128xf32>
      tpu.vector_store %arg7[%c0_12, %c0_13], %22 {strides = array<i32>} : memref<2x128xf32, #tpu.memory_space<vmem>>, vector<2x128xf32>,
    } else {
    }
    return
  }
  func.func @transform_0(%arg0: i32, %arg1: i32, %arg2: memref<1xi32, #tpu.memory_space<smem>>) -> (i32, i32) {
    %c0_i32 = arith.constant 0 : i32
    %c0_i32_0 = arith.constant 0 : i32
    return %arg0, %c0_i32 : i32, i32
  }
  func.func @transform_1(%arg0: i32, %arg1: i32, %arg2: memref<1xi32, #tpu.memory_space<smem>>) -> (i32, i32, i32) {
    %0 = arith.index_cast %arg0 : i32 to index
    %1 = memref.load %arg2[%0] : memref<1xi32, #tpu.memory_space<smem>>
    %c1_i32 = arith.constant 1 : i32
    %2 = arith.subi %1, %c1_i32 : i32
    %c0_i32 = arith.constant 0 : i32
    %3 = arith.maxsi %2, %c0_i32 : i32
    %4 = arith.minsi %arg1, %3 : i32
    %c0_i32_0 = arith.constant 0 : i32
    %c0_i32_1 = arith.constant 0 : i32
    return %arg0, %4, %c0_i32_0 : i32, i32, i32
  }
  func.func @transform_2(%arg0: i32, %arg1: i32, %arg2: memref<1xi32, #tpu.memory_space<smem>>) -> (i32, i32) {
    %c0_i32 = arith.constant 0 : i32
    %c0_i32_0 = arith.constant 0 : i32
    %c0_i32_1 = arith.constant 0 : i32
    return %c0_i32, %c0_i32_0 : i32, i32
  }
  func.func @transform_3(%arg0: i32, %arg1: i32, %arg2: memref<1xi32, #tpu.memory_space<smem>>) -> (i32, i32) {
    %c0_i32 = arith.constant 0 : i32
    %c0_i32_0 = arith.constant 0 : i32
    %c0_i32_1 = arith.constant 0 : i32
    return %c0_i32, %c0_i32_0 : i32, i32
  }
  func.func @transform_4(%arg0: i32, %arg1: i32, %arg2: memref<1xi32, #tpu.memory_space<smem>>) -> (i32, i32) {
    %c0_i32 = arith.constant 0 : i32
    %c0_i32_0 = arith.constant 0 : i32
    return %arg0, %c0_i32 : i32, i32
  }
}

</mosaic_0001>

<llo_original>
// kernel: tpu_custom_call.1
$region0: #{tpu_custom_call.1}
  #allocation0 [shape = 'u32[]', space=smem, size = 0x4, offset = 0x4, fixed_abs, tag = 'smem constant byte address 0x4 - core index']
  #allocation1 [shape = 'u32[144,128]{1,0:T(1,128)}', space=vmem, size = 0x12000, scoped, tag = 'internal scratch']
  #allocation2 [shape = 'f32[2,32]{1,0:T(2,128)}', space=vmem, size = 0x400, scoped, tag = 'scratch operand']
  #allocation3 [shape = 's32[1]{0}', space=sflag, size = 0x4, scoped, tag = 'scoped memory for tpu_custom_call.1']
  #allocation4 [shape = 's32[1]{0:T(128)S(6)}', space=smem, size = 0x200, scoped, tag = 'prefetched SMEM operand 0']
  %s0 = inlined_call_operand.<no memory space> [shape: s32[1], index: 0, kind: input, shape index: {}]
  %s1 = inlined_call_operand.vmem [shape: s32[2,1], index: 1, kind: input, shape index: {}]
  %s2 = inlined_call_operand.hbm [shape: f32[2,8,32], index: 2, kind: input, shape index: {}]
  %s3 = inlined_call_operand.hbm [shape: f32[32,128], index: 3, kind: input, shape index: {}]
  %s4 = inlined_call_operand.vmem [shape: f32[1,128], index: 4, kind: input, shape index: {}]
  %s5 = inlined_call_operand.hbm [shape: f32[2,128], index: 5, kind: output, shape index: {}]
  %s6 = sld [smem:[#allocation0]]
  $region46: #{tpu_custom_call.1} parent=0
    _
  %s8 = ssub.s32 1, %s6
  %s9 = scalar_select 0, %s8, %s6
  %10 = sst [smem:[#allocation4]] %s0
  $region1: #{tpu_custom_call.1} parent=0
    #allocation5 [shape = 'u8[8192]{0}', space=vmem, size = 0x2000, scoped, tag = 'input window, operand 2, single buffered']
    #allocation6 [shape = 's32[1]{0}', space=sflag, size = 0x4, scoped, tag = 'scoped memory for tpu_custom_call.1']
    #allocation7 [shape = 's32[1]{0}', space=sflag, size = 0x4, scoped, tag = 'scoped memory for tpu_custom_call.1']
    #allocation8 [shape = 'u8[16384]{0}', space=vmem, size = 0x4000, scoped, tag = 'input window, operand 3, single buffered']
    #allocation9 [shape = 's32[1]{0}', space=sflag, size = 0x4, scoped, tag = 'scoped memory for tpu_custom_call.1']
    #allocation10 [shape = 'u8[1024]{0}', space=vmem, size = 0x400, scoped, tag = 'output window, operand 0, single buffered']
    %11 = vsyncpa [#allocation6], 0
    %12 = vsyncpa [#allocation9], 0
    %13 = vsyncpa [#allocation7], 0
    // Predicated region
    $region2: #{tpu_custom_call.1} parent=1 // pred_check
      _
    $region3: #{tpu_custom_call.1} parent=1 // pred_check_branch
      %15 = sbr.rel (0) target = $region5
    $region4: #{tpu_custom_call.1} parent=1 // pred_region
      _
    $region5: #{tpu_custom_call.1} parent=1 // pred_fallthru
      _
    // Predicated region
    $region6: #{tpu_custom_call.1} parent=1 // pred_check
      _
    $region7: #{tpu_custom_call.1} parent=1 // pred_check_branch
      %17 = sbr.rel (0) target = $region9
    $region8: #{tpu_custom_call.1} parent=1 // pred_region
      %s18 = sld [smem:[#allocation4]]
      %s19 = ssub.s32 %s18, 1
      %p20 = scmp.gt.s32.totalorder %s19, 0
      %s21 = scalar_select %p20, %s19, 0
      %p22 = scmp.lt.s32.totalorder 0, %s21
      %s23 = scalar_select %p22, 0, %s21
      %s25 = ssub.s32 256, 256
      %26 = vsyncadd [#allocation6], %s25
      %s27 = smul.addr %s23, 128
      %s28 = scalar_lea.hbm %s2, %s27
      %s29 = sshll.u32 [#allocation5], 4
      %s30 = int_to_ptr.vmem [resolvable:$true] %s29
      %35 = dma.hbm_to_vmem [thread:$0]  %s28, 256, %s30, [#allocation6], 128, 128, 8
    $region9: #{tpu_custom_call.1} parent=1 // pred_fallthru
      _
    // Predicated region
    $region10: #{tpu_custom_call.1} parent=1 // pred_check
      _
    $region11: #{tpu_custom_call.1} parent=1 // pred_check_branch
      %37 = sbr.rel (0) target = $region13
    $region12: #{tpu_custom_call.1} parent=1 // pred_region
      %s39 = ssub.s32 512, 512
      %40 = vsyncadd [#allocation9], %s39
      %s41 = sshll.u32 [#allocation8], 4
      %s42 = int_to_ptr.vmem [resolvable:$true] %s41
      %47 = dma.hbm_to_vmem [thread:$0]  %s3, 512, %s42, [#allocation9], 128, 128, 8
    $region13: #{tpu_custom_call.1} parent=1 // pred_fallthru
      _
    // Predicated region
    $region14: #{tpu_custom_call.1} parent=1 // pred_check
      _
    $region15: #{tpu_custom_call.1} parent=1 // pred_check_branch
      %49 = sbr.rel (0) target = $region17
    $region16: #{tpu_custom_call.1} parent=1 // pred_region
      _
    $region17: #{tpu_custom_call.1} parent=1 // pred_fallthru
      _
    // Predicated region
    $region18: #{tpu_custom_call.1} parent=1 // pred_check
      _
    $region19: #{tpu_custom_call.1} parent=1 // pred_check_branch
      %51 = sbr.rel (0) target = $region21
    $region20: #{tpu_custom_call.1} parent=1 // pred_region
      %52 = dma.done [#allocation6], 256
    $region21: #{tpu_custom_call.1} parent=1 // pred_fallthru
      _
    // Predicated region
    $region22: #{tpu_custom_call.1} parent=1 // pred_check
      _
    $region23: #{tpu_custom_call.1} parent=1 // pred_check_branch
      %54 = sbr.rel (0) target = $region25
    $region24: #{tpu_custom_call.1} parent=1 // pred_region
      %55 = dma.done [#allocation9], 512
    $region25: #{tpu_custom_call.1} parent=1 // pred_fallthru
      _
    %s56 = sld [smem:[#allocation4]]
    %s57 = ssub.s32 %s56, 1
    %p58 = scmp.gt.s32.totalorder %s57, 0
    %s59 = scalar_select %p58, %s57, 0
    %p60 = scmp.lt.s32.totalorder 0, %s59
    %s61 = scalar_select %p60, 0, %s59
    %p62 = scmp.eq.s32.totalorder 0, 0
    // Predicated region
    $region26: #{tpu_custom_call.1} parent=1 // pred_check
      %p63 = pneg %p62
    $region27: #{tpu_custom_call.1} parent=1 // pred_check_branch
      %65 = sbr.rel (%p63) target = $region29
    $region28: #{tpu_custom_call.1} parent=1 // pred_region
      %vm66 = vcmask 254976
      %67 = vst.msk [vmem:[#allocation2] sm:$0x3] %vm66, 0.0
    $region29: #{tpu_custom_call.1} parent=1 // pred_fallthru
      _
    %s68 = sld [smem:[#allocation4]]
    %p69 = scmp.lt.s32.totalorder 0, %s68
    // Predicated region
    $region30: #{tpu_custom_call.1} parent=1 // pred_check
      %p70 = pneg %p69
    $region31: #{tpu_custom_call.1} parent=1 // pred_check_branch
      %72 = sbr.rel (%p70) target = $region33
    $region32: #{tpu_custom_call.1} parent=1 // pred_region
      %v73 = vlaneseq
      %v74 = vshrl.u32 %v73, 7
      %s75 = smul.u32 0, 8
      %v76 = vstv %s75
      %v77 = vadd.s32 %v74, %v76
      %v78 = vld [vmem:[%s1] sm:$0x3]
      %v80 = vunpack.c.l.s4 1966171168
      %v81 = vunpack.c.0.s8 %v80
      %v82 = vlaneseq
      %v83 = vshrl.u32 %v82, 7
      %v84 = vsub.s32 %v81, %v83
      %v85 = vrot.slane %v78, %v84
      %v86 = vcombine.high %v85, %v85
      %v88 = vunpack.c.l.s4 1966171168
      %v89 = vunpack.c.0.s8 %v88
      %v90 = vlaneseq
      %v91 = vshrl.u32 %v90, 7
      %v92 = vsub.s32 %v89, %v91
      %v93 = vrot.slane %v85, %v92
      %v95 = vunpack.c.l.s4 1966171168
      %v96 = vunpack.c.0.s8 %v95
      %v97 = vlaneseq
      %v98 = vshrl.u32 %v97, 7
      %v99 = vsub.s32 %v96, %v98
      %v100 = vrot.slane %v86, %v99
      %v101 = vld [vmem:[#allocation5] sm:$0xff]
      %v102 = vld [vmem:[#allocation5 + $0x8] sm:$0xff]
      %v103 = vld [vmem:[#allocation2] sm:$0x3]
      %v104 = vlaneseq
      %v105 = vshrl.u32 %v104, 7
      %v106 = vsub.s32 0, %v105
      %v107 = vrot.slane %v93, %v106
      %v108 = vlaneseq
      %v109 = vshrl.u32 %v108, 7
      %v110 = vsub.s32 0, %v109
      %v111 = vrot.slane %v100, %v110
      %vm112 = vcmp.lt.s32.totalorder %v77, %v107
      %vm113 = vcmp.lt.s32.totalorder %v77, %v111
      %v114 = vsel %vm112, 1, 0
      %v115 = vsel %vm113, 1, 0
      %116 = vset.pattern.permute.xlu0 0
      %117 = vperm.xlu0 %116, %v114
      %v118 = vpop.permute.xlu0 %117
      %119 = vset.pattern.permute.xlu0 0
      %120 = vperm.xlu0 %119, %v115
      %v121 = vpop.permute.xlu0 %120
      %vm122 = vcmp.eq.s32.totalorder %v118, 1
      %vm123 = vcmp.eq.s32.totalorder %v121, 1
      %v124 = vsel %vm122, %v101, 0.0
      %v125 = vsel %vm123, %v102, 0.0
      %vm126 = vcmask 261120
      %v127 = vsel %vm126, %v124, 0.0
      %v128 = vrot.slane %v127, 4
      %v129 = vadd.f32 %v127, %v128
      %v130 = vrot.slane %v129, 2
      %v131 = vadd.f32 %v129, %v130
      %v132 = vrot.slane %v131, 1
      %v133 = vadd.f32 %v131, %v132
      %v134 = vsel %vm126, %v125, 0.0
      %v135 = vrot.slane %v134, 4
      %v136 = vadd.f32 %v134, %v135
      %v137 = vrot.slane %v136, 2
      %v138 = vadd.f32 %v136, %v137
      %v139 = vrot.slane %v138, 1
      %v140 = vadd.f32 %v138, %v139
      %vm143 = vcmask 1041409
      %v144 = vsel %vm143, %v140, %v133
      %v146 = vadd.f32 %v103, %v144
      %vm147 = vcmask 254976
      %148 = vst.msk [vmem:[#allocation2] sm:$0x3] %vm147, %v146
    $region33: #{tpu_custom_call.1} parent=1 // pred_fallthru
      _
    // Predicated region
    $region34: #{tpu_custom_call.1} parent=1 // pred_check
      %p149 = pneg %p62
    $region35: #{tpu_custom_call.1} parent=1 // pred_check_branch
      %151 = sbr.rel (%p149) target = $region37
    $region36: #{tpu_custom_call.1} parent=1 // pred_region
      %v152 = vld [vmem:[%s1] sm:$0x3]
      %v153 = vcvt.s32.f32 %v152
      %v154 = vmax.f32 %v153, 1.0
      %v155 = vld [vmem:[#allocation2] sm:$0x3]
      %157 = vset.pattern.permute.xlu0 0
      %158 = vperm.xlu0 %157, %v154
      %v159 = vpop.permute.xlu0 %158
      %v161 = vrcp.pop %v159
      %v162 = vmul.f32 %v155, %v161
      %v163 = vld [vmem:[#allocation8] sm:$0xff]
      %v164 = vld [vmem:[#allocation8 + $0x8] sm:$0xff]
      %v165 = vld [vmem:[#allocation8 + $0x10] sm:$0xff]
      %v166 = vld [vmem:[#allocation8 + $0x18] sm:$0xff]
      %v167 = vld [vmem:[%s4] sm:$0x1]
      %v169 = vlaneseq
      %v170 = vshrl.u32 %v169, 7
      %v171 = vsub.s32 0, %v170
      %v172 = vrot.slane %v167, %v171
      %vm174 = vcmask 261120
      %v176 = vsel %vm174, %v162, 0
      %178 = vmatprep.subr.mxu0 0.0
      %179 = vmatpush1.msra.mxu0 0.0
      %180 = vmatprep.subr.mxu0 0.0
      %181 = vmatpush1.msra.mxu0 0.0
      %182 = vmatprep.subr.mxu0 0.0
      %183 = vmatpush1.msra.mxu0 0.0
      %184 = vmatprep.subr.mxu0 0.0
      %185 = vmatpush1.msra.mxu0 0.0
      %186 = vmatprep.subr.mxu0 0.0
      %187 = vmatpush1.msra.mxu0 0.0
      %188 = vmatprep.subr.mxu0 0.0
      %189 = vmatpush1.msra.mxu0 0.0
      %190 = vmatprep.subr.mxu0 0.0
      %191 = vmatpush1.msra.mxu0 0.0
      %192 = vmatprep.subr.mxu0 0.0
      %193 = vmatpush1.msra.mxu0 0.0
      %194 = vmatprep.subr.mxu0 0.0
      %195 = vmatpush1.msra.mxu0 0.0
      %196 = vmatprep.subr.mxu0 0.0
      %197 = vmatpush1.msra.mxu0 0.0
      %198 = vmatprep.subr.mxu0 0.0
      %199 = vmatpush1.msra.mxu0 0.0
      %200 = vmatprep.subr.mxu0 0.0
      %201 = vmatpush1.msra.mxu0 0.0
      %202 = vmatprep.subr.mxu0 0.0
      %203 = vmatpush1.msra.mxu0 %v166
      %204 = vmatprep.subr.mxu0 0.0
      %205 = vmatpush1.msra.mxu0 %v165
      %206 = vmatprep.subr.mxu0 0.0
      %207 = vmatpush1.msra.mxu0 %v164
      %208 = vmatprep.subr.mxu0 0.0
      %209 = vmatpush1.msra.mxu0 %v163
      %210 = vmatprep.subr.mxu0 0.0
      %211 = vmatpush2.msra.mxu0 0.0
      %212 = vmatprep.subr.mxu0 0.0
      %213 = vmatpush2.msra.mxu0 0.0
      %214 = vmatprep.subr.mxu0 0.0
      %215 = vmatpush2.msra.mxu0 0.0
      %216 = vmatprep.subr.mxu0 0.0
      %217 = vmatpush2.msra.mxu0 0.0
      %218 = vmatprep.subr.mxu0 0.0
      %219 = vmatpush2.msra.mxu0 0.0
      %220 = vmatprep.subr.mxu0 0.0
      %221 = vmatpush2.msra.mxu0 0.0
      %222 = vmatprep.subr.mxu0 0.0
      %223 = vmatpush2.msra.mxu0 0.0
      %224 = vmatprep.subr.mxu0 0.0
      %225 = vmatpush2.msra.mxu0 0.0
      %226 = vmatprep.subr.mxu0 0.0
      %227 = vmatpush2.msra.mxu0 0.0
      %228 = vmatprep.subr.mxu0 0.0
      %229 = vmatpush2.msra.mxu0 0.0
      %230 = vmatprep.subr.mxu0 0.0
      %231 = vmatpush2.msra.mxu0 0.0
      %232 = vmatprep.subr.mxu0 0.0
      %233 = vmatpush2.msra.mxu0 0.0
      %234 = vmatprep.subr.mxu0 0.0
      %235 = vmatpush2.msra.mxu0 0.0
      %236 = vmatprep.subr.mxu0 0.0
      %237 = vmatpush2.msra.mxu0 0.0
      %238 = vmatprep.subr.mxu0 0.0
      %239 = vmatpush2.msra.mxu0 0.0
      %240 = vmatprep.subr.mxu0 0.0
      %241 = vmatpush2.msra.mxu0 0.0
      %242 = vmatprep.mubr.f32.mxu0 0.0
      %243 = vmatmul.mubr.f32.gmra.mxu0 %v176
      %v244 = vpop.f32.mrf.mxu0
      %v245 = vadd.f32 %v172, %v244
      %v246 = vpop.f32.mrf.mxu0
      %247 = vdwg.mxu0
      %248 = vst [vmem:[#allocation10] sm:$0x3] %v245
    $region37: #{tpu_custom_call.1} parent=1 // pred_fallthru
      _
    // Predicated region
    $region38: #{tpu_custom_call.1} parent=1 // pred_check
      _
    $region39: #{tpu_custom_call.1} parent=1 // pred_check_branch
      %250 = sbr.rel (0) target = $region41
    $region40: #{tpu_custom_call.1} parent=1 // pred_region
      %s252 = ssub.s32 32, 32
      %253 = vsyncadd [#allocation7], %s252
      %s255 = sshll.u32 [#allocation10], 4
      %s256 = int_to_ptr.vmem [resolvable:$true] %s255
      %258 = dma.vmem_to_hbm [thread:$0]  %s256, 32, %s5, [#allocation7]
    $region41: #{tpu_custom_call.1} parent=1 // pred_fallthru
      _
    // Predicated region
    $region42: #{tpu_custom_call.1} parent=1 // pred_check
      _
    $region43: #{tpu_custom_call.1} parent=1 // pred_check_branch
      %260 = sbr.rel (0) target = $region45
    $region44: #{tpu_custom_call.1} parent=1 // pred_region
      %261 = dma.done [#allocation7], 32
    $region45: #{tpu_custom_call.1} parent=1 // pred_fallthru
      _
    %262 = vsyncpa [#allocation6], 1
    %263 = vsyncpa [#allocation9], 1
    %264 = vsyncpa [#allocation7], 1

</llo_original>
